<compile_context>
chip_gen: v7x
topology: tpu7x:2x2x1
jax: 0.10.0
libtpu: 0.0.40
codegen_flags: <defaults>
</compile_context>

<pallas_src>
import functools

import jax
import jax.numpy as jnp
from jax.experimental import pallas as pl
from jax.experimental.pallas import tpu as pltpu

_LANE = 128
_SUBLANE = 8            # f32 sublane tile; x / out stay f32 in HBM
_MAX_BLOCK_B = 1024


def _round_up(x, m):
    return (x + m - 1) // m * m


@functools.lru_cache(maxsize=1)
def _tpu_hw_info():
    """(vmem_capacity_bytes, dual_tensorcore). Conservative fallback if the query fails."""
    vmem = 64 * 1024 * 1024            # v7x per-TC VMEM; safe lower bound everywhere
    dual = False
    try:                               # narrow guard: only the optional hardware query
        info = pltpu.get_tpu_info()
        vmem = int(getattr(info, "vmem_capacity_bytes", vmem))
    except Exception:
        pass
    try:
        dual = "7" in jax.devices()[0].device_kind    # v7x: 2 TensorCores per chip
    except Exception:
        pass
    return vmem, dual


def _ednn_kernel(x_ref, w1_ref, b1_ref, w2_ref, b2_ref, out_ref):
    # Cast the f32 activation tile to the MXU operand dtype in VMEM (no HBM copy).
    x = x_ref[...].astype(w1_ref.dtype)
    # fc1 on the MXU with f32 accumulation; bias + ReLU in f32 on the VPU (v5e-safe).
    h = jnp.dot(x, w1_ref[...], preferred_element_type=jnp.float32)
    h = jnp.maximum(h + b1_ref[...], 0.0)
    # TODO(synk): training-mode F.dropout (pltpu.prng_seed/prng_random_bits mask with
    # 1/(1-p) scaling) is omitted; this forward matches eval/inference mode.
    o = jnp.dot(h.astype(w2_ref.dtype), w2_ref[...],
                preferred_element_type=jnp.float32)
    out_ref[...] = (o + b2_ref[...]).astype(out_ref.dtype)


def prepare_ednn_params(w1, b1, w2, b2, *, compute_dtype=jnp.bfloat16):
    """Pad/cast the EDNN parameters ONCE; cache and reuse the result across calls.

    Layout is (in, hidden) / (hidden, out), i.e. the transpose of PyTorch nn.Linear's
    stored (out, in) weights.  bf16 operands (default) are MXU-native on all TPU
    generations and halve the weight HBM bytes; biases stay f32.
    """
    cdtype = jnp.dtype(compute_dtype)
    in_dim, hidden_dim = w1.shape
    out_dim = w2.shape[1]
    hid_p = _round_up(hidden_dim, _LANE)
    out_p = _round_up(out_dim, _LANE)
    w1_p = jnp.pad(w1.astype(cdtype), ((0, 0), (0, hid_p - hidden_dim)))
    w2_p = jnp.pad(w2.astype(cdtype), ((0, hid_p - hidden_dim), (0, out_p - out_dim)))
    b1_p = jnp.pad(b1.astype(jnp.float32), (0, hid_p - hidden_dim)).reshape(1, hid_p)
    b2_p = jnp.pad(b2.astype(jnp.float32), (0, out_p - out_dim)).reshape(1, out_p)
    return w1_p, b1_p, w2_p, b2_p, out_dim


def _choose_block_b(B, in_dim, hid_p, out_p, weight_itemsize, vmem_bytes):
    """Largest batch tile (cap 1024) whose double-buffered x/out tiles plus the
    (double-buffered) resident weights fit a generation-aware VMEM budget."""
    budget = int(vmem_bytes * 0.6)
    in_lane = _round_up(in_dim, _LANE)                 # VMEM lane padding of the x tile
    weight_bytes = 2 * (_round_up(in_dim, _SUBLANE) * hid_p
                        + hid_p * out_p) * weight_itemsize
    bias_bytes = 2 * _SUBLANE * (hid_p + out_p) * 4    # (1, N) blocks pad to 8 sublanes

    def tile_bytes(bb):
        return 2 * bb * in_lane * 4 + 2 * bb * out_p * 4

    bb = min(_MAX_BLOCK_B, max(_SUBLANE, _round_up(B, _SUBLANE)))
    while bb > _SUBLANE and weight_bytes + bias_bytes + tile_bytes(bb) > budget:
        bb = max(_SUBLANE, (bb // 2) // _SUBLANE * _SUBLANE)
    # TODO(synk): if the weights alone exceed the budget (huge hidden dims on v7x's
    # 64 MiB VMEM), add a K/N grid axis with an f32 VMEM accumulator + pl.when
    # init/finalize instead of letting block_b collapse toward the 8-row minimum.
    return bb


@functools.partial(
    jax.jit, static_argnames=("out_dim", "block_b", "vmem_limit", "core_parallel"))
def _ednn_forward_impl(x, w1_p, b1_p, w2_p, b2_p, *,
                       out_dim, block_b, vmem_limit, core_parallel):
    B, in_dim = x.shape
    hid_p = w1_p.shape[1]
    out_p = w2_p.shape[1]
    grid = ((B + block_b - 1) // block_b,)   # ragged last tile; no batch padding in HBM

    if core_parallel and hasattr(pltpu, "CORE_PARALLEL"):
        semantics = (pltpu.CORE_PARALLEL,)   # shard the batch axis across v7x's 2 TCs
    else:
        semantics = ("parallel",)

    out_padded = pl.pallas_call(
        _ednn_kernel,
        out_shape=jax.ShapeDtypeStruct((B, out_p), x.dtype),
        grid_spec=pltpu.PrefetchScalarGridSpec(
            num_scalar_prefetch=0,
            grid=grid,
            in_specs=[
                # x: unpadded; last block dim == full in_dim (legal: equals array extent).
                pl.BlockSpec((block_b, in_dim), lambda i: (i, 0)),
                # Weights/biases: constant index_map -> resident across the whole grid.
                pl.BlockSpec((in_dim, hid_p), lambda i: (0, 0)),
                pl.BlockSpec((1, hid_p), lambda i: (0, 0)),
                pl.BlockSpec((hid_p, out_p), lambda i: (0, 0)),
                pl.BlockSpec((1, out_p), lambda i: (0, 0)),
            ],
            # Lane-dense (128-padded) output tile -> unmasked vst on the lane axis.
            out_specs=pl.BlockSpec((block_b, out_p), lambda i: (i, 0)),
        ),
        compiler_params=pltpu.CompilerParams(
            dimension_semantics=semantics,
            vmem_limit_bytes=vmem_limit,
        ),
    )(x, w1_p, b1_p, w2_p, b2_p)

    return out_padded[:, :out_dim]


def ednn_forward(x, params):
    """EDNN forward: relu(x @ w1 + b1) @ w2 + b2 (dropout = identity, eval mode).

    `params` is the output of prepare_ednn_params (pad/cast once, reuse across calls).
    """
    w1_p, b1_p, w2_p, b2_p, out_dim = params
    B, in_dim = x.shape
    hid_p = w1_p.shape[1]
    out_p = w2_p.shape[1]

    vmem, dual = _tpu_hw_info()
    block_b = _choose_block_b(B, in_dim, hid_p, out_p,
                              jnp.dtype(w1_p.dtype).itemsize, vmem)
    vmem_limit = min(int(vmem * 0.75), 100 * 1024 * 1024)
    n_steps = (B + block_b - 1) // block_b
    core_parallel = dual and n_steps >= 2    # only worth sharding with >= 2 grid steps

    return _ednn_forward_impl(x, w1_p, b1_p, w2_p, b2_p,
                              out_dim=out_dim, block_b=block_b,
                              vmem_limit=vmem_limit, core_parallel=core_parallel)


def init_ednn_params(key, in_dim, hidden_dim, out_dim, dtype=jnp.float32):
    """Deterministic synthetic parameters in the (in, out) layout used by this kernel."""
    k1, k2, k3, k4 = jax.random.split(key, 4)
    w1 = jax.random.normal(k1, (in_dim, hidden_dim), dtype) * 0.05
    b1 = jax.random.normal(k2, (hidden_dim,), dtype) * 0.05
    w2 = jax.random.normal(k3, (hidden_dim, out_dim), dtype) * 0.05
    b2 = jax.random.normal(k4, (out_dim,), dtype) * 0.05
    return w1, b1, w2, b2


def ednn_reference(x, w1, b1, w2, b2):
    h = jnp.maximum(x @ w1 + b1, 0.0)
    return h @ w2 + b2


if __name__ == "__main__":
    key = jax.random.PRNGKey(0)
    kx, kp = jax.random.split(key)

    batch, in_dim, hidden_dim, out_dim = 16, 32, 64, 16
    x = jax.random.normal(kx, (batch, in_dim), jnp.float32)
    w1, b1, w2, b2 = init_ednn_params(kp, in_dim, hidden_dim, out_dim)

    ref = ednn_reference(x, w1, b1, w2, b2)

    # f32-operand path: exact match vs. the reference.
    params_f32 = prepare_ednn_params(w1, b1, w2, b2, compute_dtype=jnp.float32)
    out_f32 = jax.block_until_ready(ednn_forward(x, params_f32))
    assert out_f32.shape == (batch, out_dim)
    assert jnp.allclose(out_f32, ref, atol=1e-5, rtol=1e-5), "f32 mismatch vs. reference"

    # Default bf16-operand path (MXU-native on v5e/v6e/v7x), f32 accumulate / f32 output.
    params_bf16 = prepare_ednn_params(w1, b1, w2, b2)
    out_bf16 = jax.block_until_ready(ednn_forward(x, params_bf16))
    assert out_bf16.shape == (batch, out_dim)
    assert jnp.allclose(out_bf16, ref, atol=5e-2, rtol=5e-2), "bf16 mismatch vs. reference"

    print("KERNEL_OK")
</pallas_src>

<mosaic_0001>
module attributes {stable_mosaic.version = 11 : i64} {
  func.func @_ednn_kernel(%arg0: i32, %arg1: memref<16x32xf32, #tpu.memory_space<vmem>>, %arg2: memref<32x128xf32, #tpu.memory_space<vmem>>, %arg3: memref<1x128xf32, #tpu.memory_space<vmem>>, %arg4: memref<128x128xf32, #tpu.memory_space<vmem>>, %arg5: memref<1x128xf32, #tpu.memory_space<vmem>>, %arg6: memref<16x128xf32, #tpu.memory_space<vmem>>) attributes {dimension_semantics = [#tpu.dimension_semantics<parallel>], iteration_bounds = array<i64: 1>, scalar_prefetch = 0 : i64, scratch_operands = 0 : i64, tpu.core_type = #tpu.core_type<tc>, window_params = [{transform_indices = @transform_0, window_bounds = array<i64: 16, 32>}, {pipeline_mode = #tpu.pipeline_mode<synchronous>, transform_indices = @transform_1, window_bounds = array<i64: 32, 128>}, {pipeline_mode = #tpu.pipeline_mode<synchronous>, transform_indices = @transform_2, window_bounds = array<i64: 1, 128>}, {pipeline_mode = #tpu.pipeline_mode<synchronous>, transform_indices = @transform_3, window_bounds = array<i64: 128, 128>}, {pipeline_mode = #tpu.pipeline_mode<synchronous>, transform_indices = @transform_4, window_bounds = array<i64: 1, 128>}, {transform_indices = @transform_5, window_bounds = array<i64: 16, 128>}]} {
    %c0 = arith.constant 0 : index
    %c0_0 = arith.constant 0 : index
    %0 = vector.load %arg1[%c0, %c0_0] : memref<16x32xf32, #tpu.memory_space<vmem>>, vector<16x32xf32>
    %c0_1 = arith.constant 0 : index
    %c0_2 = arith.constant 0 : index
    %1 = vector.load %arg2[%c0_1, %c0_2] : memref<32x128xf32, #tpu.memory_space<vmem>>, vector<32x128xf32>
    %cst = arith.constant dense<0.000000e+00> : vector<16x128xf32>
    %2 = tpu.matmul %0, %1, %cst {dimension_numbers = #tpu.dot_dimension_numbers<[1], [0], [0], [1], [0, 0, 1, 1], [], []>} : vector<16x32xf32>, vector<32x128xf32>, vector<16x128xf32> -> vector<16x128xf32>
    %c0_3 = arith.constant 0 : index
    %c0_4 = arith.constant 0 : index
    %3 = vector.load %arg3[%c0_3, %c0_4] : memref<1x128xf32, #tpu.memory_space<vmem>>, vector<1x128xf32>
    %4 = vector.broadcast %3 : vector<1x128xf32> to vector<16x128xf32>
    %5 = arith.addf %2, %4 : vector<16x128xf32>
    %cst_5 = arith.constant 0.000000e+00 : f32
    %6 = vector.broadcast %cst_5 : f32 to vector<16x128xf32>
    %7 = arith.maximumf %5, %6 : vector<16x128xf32>
    %c0_6 = arith.constant 0 : index
    %c0_7 = arith.constant 0 : index
    %8 = vector.load %arg4[%c0_6, %c0_7] : memref<128x128xf32, #tpu.memory_space<vmem>>, vector<128x128xf32>
    %cst_8 = arith.constant dense<0.000000e+00> : vector<16x128xf32>
    %9 = tpu.matmul %7, %8, %cst_8 {dimension_numbers = #tpu.dot_dimension_numbers<[1], [0], [0], [1], [0, 0, 1, 1], [], []>} : vector<16x128xf32>, vector<128x128xf32>, vector<16x128xf32> -> vector<16x128xf32>
    %c0_9 = arith.constant 0 : index
    %c0_10 = arith.constant 0 : index
    %10 = vector.load %arg5[%c0_9, %c0_10] : memref<1x128xf32, #tpu.memory_space<vmem>>, vector<1x128xf32>
    %11 = vector.broadcast %10 : vector<1x128xf32> to vector<16x128xf32>
    %12 = arith.addf %9, %11 : vector<16x128xf32>
    %c0_11 = arith.constant 0 : index
    %c0_12 = arith.constant 0 : index
    %13 = vector.load %arg6[%c0_11, %c0_12] : memref<16x128xf32, #tpu.memory_space<vmem>>, vector<16x128xf32>
    tpu.vector_store %arg6[%c0_11, %c0_12], %12 {strides = array<i32>} : memref<16x128xf32, #tpu.memory_space<vmem>>, vector<16x128xf32>,
    return
  }
  func.func @transform_0(%arg0: i32) -> (i32, i32) {
    %c0_i32 = arith.constant 0 : i32
    %c0_i32_0 = arith.constant 0 : i32
    return %arg0, %c0_i32 : i32, i32
  }
  func.func @transform_1(%arg0: i32) -> (i32, i32) {
    %c0_i32 = arith.constant 0 : i32
    %c0_i32_0 = arith.constant 0 : i32
    %c0_i32_1 = arith.constant 0 : i32
    return %c0_i32, %c0_i32_0 : i32, i32
  }
  func.func @transform_2(%arg0: i32) -> (i32, i32) {
    %c0_i32 = arith.constant 0 : i32
    %c0_i32_0 = arith.constant 0 : i32
    %c0_i32_1 = arith.constant 0 : i32
    return %c0_i32, %c0_i32_0 : i32, i32
  }
  func.func @transform_3(%arg0: i32) -> (i32, i32) {
    %c0_i32 = arith.constant 0 : i32
    %c0_i32_0 = arith.constant 0 : i32
    %c0_i32_1 = arith.constant 0 : i32
    return %c0_i32, %c0_i32_0 : i32, i32
  }
  func.func @transform_4(%arg0: i32) -> (i32, i32) {
    %c0_i32 = arith.constant 0 : i32
    %c0_i32_0 = arith.constant 0 : i32
    %c0_i32_1 = arith.constant 0 : i32
    return %c0_i32, %c0_i32_0 : i32, i32
  }
  func.func @transform_5(%arg0: i32) -> (i32, i32) {
    %c0_i32 = arith.constant 0 : i32
    %c0_i32_0 = arith.constant 0 : i32
    return %arg0, %c0_i32 : i32, i32
  }
}

</mosaic_0001>

<llo_original>
// kernel: _ednn_forward_impl.1
$region0: #{_ednn_forward_impl.1}
  #allocation0 [shape = 'u32[]', space=smem, size = 0x4, offset = 0x4, fixed_abs, tag = 'smem constant byte address 0x4 - core index']
  #allocation1 [shape = 'u32[144,128]{1,0:T(1,128)}', space=vmem, size = 0x12000, scoped, tag = 'internal scratch']
  %s0 = inlined_call_operand.hbm [shape: f32[16,32], index: 0, kind: input, shape index: {}]
  %s1 = inlined_call_operand.hbm [shape: f32[32,128], index: 1, kind: input, shape index: {}]
  %s2 = inlined_call_operand.vmem [shape: f32[1,128], index: 2, kind: input, shape index: {}]
  %s3 = inlined_call_operand.hbm [shape: f32[128,128], index: 3, kind: input, shape index: {}]
  %s4 = inlined_call_operand.vmem [shape: f32[1,128], index: 4, kind: input, shape index: {}]
  %s5 = inlined_call_operand.hbm [shape: f32[16,128], index: 5, kind: output, shape index: {}]
  %s6 = sld [smem:[#allocation0]]
  $region42: #{_ednn_forward_impl.1} parent=0
    _
  %s8 = ssub.s32 1, %s6
  %s9 = scalar_select 0, %s8, %s6
  $region1: #{_ednn_forward_impl.1} parent=0
    #allocation2 [shape = 'u8[8192]{0}', space=vmem, size = 0x2000, scoped, tag = 'input window, operand 0, single buffered']
    #allocation3 [shape = 's32[1]{0}', space=sflag, size = 0x4, scoped, tag = 'scoped memory for _ednn_forward_impl.1']
    #allocation4 [shape = 's32[1]{0}', space=sflag, size = 0x4, scoped, tag = 'scoped memory for _ednn_forward_impl.1']
    #allocation5 [shape = 'u8[16384]{0}', space=vmem, size = 0x4000, scoped, tag = 'input window, operand 1, single buffered']
    #allocation6 [shape = 's32[1]{0}', space=sflag, size = 0x4, scoped, tag = 'scoped memory for _ednn_forward_impl.1']
    #allocation7 [shape = 'u8[65536]{0}', space=vmem, size = 0x10000, scoped, tag = 'input window, operand 3, single buffered']
    #allocation8 [shape = 'u8[8192]{0}', space=vmem, size = 0x2000, scoped, tag = 'output window, operand 0, single buffered']
    %10 = vsyncpa [#allocation3], 0
    %11 = vsyncpa [#allocation6], 0
    %12 = vsyncpa [#allocation4], 0
    // Predicated region
    $region2: #{_ednn_forward_impl.1} parent=1 // pred_check
      _
    $region3: #{_ednn_forward_impl.1} parent=1 // pred_check_branch
      %14 = sbr.rel (0) target = $region5
    $region4: #{_ednn_forward_impl.1} parent=1 // pred_region
      %s16 = ssub.s32 256, 256
      %17 = vsyncadd [#allocation3], %s16
      %s18 = sshll.u32 [#allocation2], 4
      %s19 = int_to_ptr.vmem [resolvable:$true] %s18
      %24 = dma.hbm_to_vmem [thread:$0]  %s0, 256, %s19, [#allocation3], 128, 128, 8
    $region5: #{_ednn_forward_impl.1} parent=1 // pred_fallthru
      _
    // Predicated region
    $region6: #{_ednn_forward_impl.1} parent=1 // pred_check
      _
    $region7: #{_ednn_forward_impl.1} parent=1 // pred_check_branch
      %26 = sbr.rel (0) target = $region9
    $region8: #{_ednn_forward_impl.1} parent=1 // pred_region
      %s28 = ssub.s32 512, 512
      %29 = vsyncadd [#allocation6], %s28
      %s30 = sshll.u32 [#allocation5], 4
      %s31 = int_to_ptr.vmem [resolvable:$true] %s30
      %36 = dma.hbm_to_vmem [thread:$0]  %s1, 512, %s31, [#allocation6], 128, 128, 8
    $region9: #{_ednn_forward_impl.1} parent=1 // pred_fallthru
      _
    // Predicated region
    $region10: #{_ednn_forward_impl.1} parent=1 // pred_check
      _
    $region11: #{_ednn_forward_impl.1} parent=1 // pred_check_branch
      %38 = sbr.rel (0) target = $region13
    $region12: #{_ednn_forward_impl.1} parent=1 // pred_region
      _
    $region13: #{_ednn_forward_impl.1} parent=1 // pred_fallthru
      _
    // Predicated region
    $region14: #{_ednn_forward_impl.1} parent=1 // pred_check
      _
    $region15: #{_ednn_forward_impl.1} parent=1 // pred_check_branch
      %40 = sbr.rel (0) target = $region17
    $region16: #{_ednn_forward_impl.1} parent=1 // pred_region
      %s42 = ssub.s32 2048, 2048
      %43 = vsyncadd [#allocation6], %s42
      %s44 = sshll.u32 [#allocation7], 4
      %s45 = int_to_ptr.vmem [resolvable:$true] %s44
      %50 = dma.hbm_to_vmem [thread:$0]  %s3, 2048, %s45, [#allocation6], 128, 128, 8
    $region17: #{_ednn_forward_impl.1} parent=1 // pred_fallthru
      _
    // Predicated region
    $region18: #{_ednn_forward_impl.1} parent=1 // pred_check
      _
    $region19: #{_ednn_forward_impl.1} parent=1 // pred_check_branch
      %52 = sbr.rel (0) target = $region21
    $region20: #{_ednn_forward_impl.1} parent=1 // pred_region
      _
    $region21: #{_ednn_forward_impl.1} parent=1 // pred_fallthru
      _
    // Predicated region
    $region22: #{_ednn_forward_impl.1} parent=1 // pred_check
      _
    $region23: #{_ednn_forward_impl.1} parent=1 // pred_check_branch
      %54 = sbr.rel (0) target = $region25
    $region24: #{_ednn_forward_impl.1} parent=1 // pred_region
      %55 = dma.done [#allocation3], 256
    $region25: #{_ednn_forward_impl.1} parent=1 // pred_fallthru
      _
    // Predicated region
    $region26: #{_ednn_forward_impl.1} parent=1 // pred_check
      _
    $region27: #{_ednn_forward_impl.1} parent=1 // pred_check_branch
      %57 = sbr.rel (0) target = $region29
    $region28: #{_ednn_forward_impl.1} parent=1 // pred_region
      %58 = dma.done [#allocation6], 512
    $region29: #{_ednn_forward_impl.1} parent=1 // pred_fallthru
      _
    // Predicated region
    $region30: #{_ednn_forward_impl.1} parent=1 // pred_check
      _
    $region31: #{_ednn_forward_impl.1} parent=1 // pred_check_branch
      %60 = sbr.rel (0) target = $region33
    $region32: #{_ednn_forward_impl.1} parent=1 // pred_region
      %61 = dma.done [#allocation6], 2048
    $region33: #{_ednn_forward_impl.1} parent=1 // pred_fallthru
      _
    %v62 = vld [vmem:[#allocation2] sm:$0xff]
    %v63 = vld [vmem:[#allocation2 + $0x8] sm:$0xff]
    %v64 = vld [vmem:[#allocation5] sm:$0xff]
    %v65 = vld [vmem:[#allocation5 + $0x8] sm:$0xff]
    %v66 = vld [vmem:[#allocation5 + $0x10] sm:$0xff]
    %v67 = vld [vmem:[#allocation5 + $0x18] sm:$0xff]
    %v68 = vld [vmem:[%s2] sm:$0x1]
    %v70 = vlaneseq
    %v71 = vshrl.u32 %v70, 7
    %v72 = vsub.s32 0, %v71
    %v73 = vrot.slane %v68, %v72
    %vm75 = vcmask 261120
    %v77 = vsel %vm75, %v62, 0
    %v80 = vsel %vm75, %v63, 0
    %82 = vmatprep.subr.mxu0 0.0
    %83 = vmatpush1.msra.mxu0 %v64
    %84 = vmatprep.subr.mxu0 0.0
    %85 = vmatpush1.msra.mxu0 %v65
    %86 = vmatprep.subr.mxu0 0.0
    %87 = vmatpush1.msra.mxu0 %v66
    %88 = vmatprep.subr.mxu0 0.0
    %89 = vmatpush1.msra.mxu0 %v67
    %90 = vmatprep.subr.mxu0 0.0
    %91 = vmatpush1.msra.mxu0 0.0
    %92 = vmatprep.subr.mxu0 0.0
    %93 = vmatpush1.msra.mxu0 0.0
    %94 = vmatprep.subr.mxu0 0.0
    %95 = vmatpush1.msra.mxu0 0.0
    %96 = vmatprep.subr.mxu0 0.0
    %97 = vmatpush1.msra.mxu0 0.0
    %98 = vmatprep.subr.mxu0 0.0
    %99 = vmatpush1.msra.mxu0 0.0
    %100 = vmatprep.subr.mxu0 0.0
    %101 = vmatpush1.msra.mxu0 0.0
    %102 = vmatprep.subr.mxu0 0.0
    %103 = vmatpush1.msra.mxu0 0.0
    %104 = vmatprep.subr.mxu0 0.0
    %105 = vmatpush1.msra.mxu0 0.0
    %106 = vmatprep.subr.mxu0 0.0
    %107 = vmatpush1.msra.mxu0 0.0
    %108 = vmatprep.subr.mxu0 0.0
    %109 = vmatpush1.msra.mxu0 0.0
    %110 = vmatprep.subr.mxu0 0.0
    %111 = vmatpush1.msra.mxu0 0.0
    %112 = vmatprep.subr.mxu0 0.0
    %113 = vmatpush1.msra.mxu0 0.0
    %114 = vmatprep.subr.mxu0 0.0
    %115 = vmatpush1.msra.mxu0 0.0
    %116 = vmatprep.subr.mxu0 0.0
    %117 = vmatpush1.msra.mxu0 0.0
    %118 = vmatprep.subr.mxu0 0.0
    %119 = vmatpush1.msra.mxu0 0.0
    %120 = vmatprep.subr.mxu0 0.0
    %121 = vmatpush1.msra.mxu0 0.0
    %122 = vmatprep.subr.mxu0 0.0
    %123 = vmatpush1.msra.mxu0 0.0
    %124 = vmatprep.subr.mxu0 0.0
    %125 = vmatpush1.msra.mxu0 0.0
    %126 = vmatprep.subr.mxu0 0.0
    %127 = vmatpush1.msra.mxu0 0.0
    %128 = vmatprep.subr.mxu0 0.0
    %129 = vmatpush1.msra.mxu0 0.0
    %130 = vmatprep.subr.mxu0 0.0
    %131 = vmatpush1.msra.mxu0 0.0
    %132 = vmatprep.subr.mxu0 0.0
    %133 = vmatpush1.msra.mxu0 0.0
    %134 = vmatprep.subr.mxu0 0.0
    %135 = vmatpush1.msra.mxu0 0.0
    %136 = vmatprep.subr.mxu0 0.0
    %137 = vmatpush1.msra.mxu0 0.0
    %138 = vmatprep.subr.mxu0 0.0
    %139 = vmatpush1.msra.mxu0 0.0
    %140 = vmatprep.subr.mxu0 0.0
    %141 = vmatpush1.msra.mxu0 0.0
    %142 = vmatprep.subr.mxu0 0.0
    %143 = vmatpush1.msra.mxu0 0.0
    %144 = vmatprep.subr.mxu0 0.0
    %145 = vmatpush1.msra.mxu0 0.0
    %146 = vmatprep.mubr.f32.mxu0 0.0
    %147 = vmatmul.mubr.f32.gmra.mrb[0].mxu0 %v77
    %v148 = vpop.f32.mrb[0].mxu0
    %v149 = vadd.f32 %v73, %v148
    %v150 = vpop.f32.mrb[0].mxu0
    %151 = vmatprep.mubr.f32.mxu0 0.0
    %152 = vmatmul.mubr.f32.gmra.mrb[0].mxu0 %v80
    %v153 = vpop.f32.mrb[0].mxu0
    %v154 = vadd.f32 %v73, %v153
    %v155 = vpop.f32.mrb[0].mxu0
    %156 = vdwg.mxu0
    %v157 = vmax.f32 %v149, 0.0
    %v158 = vmax.f32 %v154, 0.0
    %v159 = vld [vmem:[#allocation7] sm:$0xff]
    %v160 = vld [vmem:[#allocation7 + $0x8] sm:$0xff]
    %v161 = vld [vmem:[#allocation7 + $0x10] sm:$0xff]
    %v162 = vld [vmem:[#allocation7 + $0x18] sm:$0xff]
    %v163 = vld [vmem:[#allocation7 + $0x20] sm:$0xff]
    %v164 = vld [vmem:[#allocation7 + $0x28] sm:$0xff]
    %v165 = vld [vmem:[#allocation7 + $0x30] sm:$0xff]
    %v166 = vld [vmem:[#allocation7 + $0x38] sm:$0xff]
    %v167 = vld [vmem:[#allocation7 + $0x40] sm:$0xff]
    %v168 = vld [vmem:[#allocation7 + $0x48] sm:$0xff]
    %v169 = vld [vmem:[#allocation7 + $0x50] sm:$0xff]
    %v170 = vld [vmem:[#allocation7 + $0x58] sm:$0xff]
    %v171 = vld [vmem:[#allocation7 + $0x60] sm:$0xff]
    %v172 = vld [vmem:[#allocation7 + $0x68] sm:$0xff]
    %v173 = vld [vmem:[#allocation7 + $0x70] sm:$0xff]
    %v174 = vld [vmem:[#allocation7 + $0x78] sm:$0xff]
    %v175 = vld [vmem:[%s4] sm:$0x1]
    %v177 = vlaneseq
    %v178 = vshrl.u32 %v177, 7
    %v179 = vsub.s32 0, %v178
    %v180 = vrot.slane %v175, %v179
    %182 = vmatprep.subr.mxu0 0.0
    %183 = vmatpush1.msra.mxu0 %v159
    %184 = vmatprep.subr.mxu0 0.0
    %185 = vmatpush1.msra.mxu0 %v160
    %186 = vmatprep.subr.mxu0 0.0
    %187 = vmatpush1.msra.mxu0 %v161
    %188 = vmatprep.subr.mxu0 0.0
    %189 = vmatpush1.msra.mxu0 %v162
    %190 = vmatprep.subr.mxu0 0.0
    %191 = vmatpush1.msra.mxu0 %v163
    %192 = vmatprep.subr.mxu0 0.0
    %193 = vmatpush1.msra.mxu0 %v164
    %194 = vmatprep.subr.mxu0 0.0
    %195 = vmatpush1.msra.mxu0 %v165
    %196 = vmatprep.subr.mxu0 0.0
    %197 = vmatpush1.msra.mxu0 %v166
    %198 = vmatprep.subr.mxu0 0.0
    %199 = vmatpush1.msra.mxu0 %v167
    %200 = vmatprep.subr.mxu0 0.0
    %201 = vmatpush1.msra.mxu0 %v168
    %202 = vmatprep.subr.mxu0 0.0
    %203 = vmatpush1.msra.mxu0 %v169
    %204 = vmatprep.subr.mxu0 0.0
    %205 = vmatpush1.msra.mxu0 %v170
    %206 = vmatprep.subr.mxu0 0.0
    %207 = vmatpush1.msra.mxu0 %v171
    %208 = vmatprep.subr.mxu0 0.0
    %209 = vmatpush1.msra.mxu0 %v172
    %210 = vmatprep.subr.mxu0 0.0
    %211 = vmatpush1.msra.mxu0 %v173
    %212 = vmatprep.subr.mxu0 0.0
    %213 = vmatpush1.msra.mxu0 %v174
    %214 = vmatprep.subr.mxu0 0.0
    %215 = vmatpush1.msra.mxu0 0.0
    %216 = vmatprep.subr.mxu0 0.0
    %217 = vmatpush1.msra.mxu0 0.0
    %218 = vmatprep.subr.mxu0 0.0
    %219 = vmatpush1.msra.mxu0 0.0
    %220 = vmatprep.subr.mxu0 0.0
    %221 = vmatpush1.msra.mxu0 0.0
    %222 = vmatprep.subr.mxu0 0.0
    %223 = vmatpush1.msra.mxu0 0.0
    %224 = vmatprep.subr.mxu0 0.0
    %225 = vmatpush1.msra.mxu0 0.0
    %226 = vmatprep.subr.mxu0 0.0
    %227 = vmatpush1.msra.mxu0 0.0
    %228 = vmatprep.subr.mxu0 0.0
    %229 = vmatpush1.msra.mxu0 0.0
    %230 = vmatprep.subr.mxu0 0.0
    %231 = vmatpush1.msra.mxu0 0.0
    %232 = vmatprep.subr.mxu0 0.0
    %233 = vmatpush1.msra.mxu0 0.0
    %234 = vmatprep.subr.mxu0 0.0
    %235 = vmatpush1.msra.mxu0 0.0
    %236 = vmatprep.subr.mxu0 0.0
    %237 = vmatpush1.msra.mxu0 0.0
    %238 = vmatprep.subr.mxu0 0.0
    %239 = vmatpush1.msra.mxu0 0.0
    %240 = vmatprep.subr.mxu0 0.0
    %241 = vmatpush1.msra.mxu0 0.0
    %242 = vmatprep.subr.mxu0 0.0
    %243 = vmatpush1.msra.mxu0 0.0
    %244 = vmatprep.subr.mxu0 0.0
    %245 = vmatpush1.msra.mxu0 0.0
    %246 = vmatprep.mubr.f32.mxu0 0.0
    %247 = vmatmul.mubr.f32.gmra.mrb[0].mxu0 %v157
    %v248 = vpop.f32.mrb[0].mxu0
    %v249 = vadd.f32 %v180, %v248
    %v250 = vpop.f32.mrb[0].mxu0
    %251 = vmatprep.mubr.f32.mxu0 0.0
    %252 = vmatmul.mubr.f32.gmra.mrb[0].mxu0 %v158
    %v253 = vpop.f32.mrb[0].mxu0
    %v254 = vadd.f32 %v180, %v253
    %v255 = vpop.f32.mrb[0].mxu0
    %256 = vdwg.mxu0
    %257 = vst [vmem:[#allocation8] sm:$0xff] %v249
    %258 = vst [vmem:[#allocation8 + $0x8] sm:$0xff] %v254
    // Predicated region
    $region34: #{_ednn_forward_impl.1} parent=1 // pred_check
      _
    $region35: #{_ednn_forward_impl.1} parent=1 // pred_check_branch
      %260 = sbr.rel (0) target = $region37
    $region36: #{_ednn_forward_impl.1} parent=1 // pred_region
      %s262 = ssub.s32 256, 256
      %263 = vsyncadd [#allocation4], %s262
      %s264 = sshll.u32 [#allocation8], 4
      %s265 = int_to_ptr.vmem [resolvable:$true] %s264
      %270 = dma.vmem_to_hbm [thread:$0]  %s265, 256, %s5, [#allocation4], 128, 128, 8
    $region37: #{_ednn_forward_impl.1} parent=1 // pred_fallthru
      _
    // Predicated region
    $region38: #{_ednn_forward_impl.1} parent=1 // pred_check
      _
    $region39: #{_ednn_forward_impl.1} parent=1 // pred_check_branch
      %272 = sbr.rel (0) target = $region41
    $region40: #{_ednn_forward_impl.1} parent=1 // pred_region
      %273 = dma.done [#allocation4], 256
    $region41: #{_ednn_forward_impl.1} parent=1 // pred_fallthru
      _
    %274 = vsyncpa [#allocation3], 1
    %275 = vsyncpa [#allocation6], 1
    %276 = vsyncpa [#allocation4], 1

</llo_original>
